<compile_context>
chip_gen: v5e
topology: v5e:2x2
jax: 0.10.0
libtpu: 0.0.40
codegen_flags: <defaults>
</compile_context>

<pallas_src>
import jax
import jax.numpy as jnp
from jax import lax
from jax.experimental import pallas as pl
from jax.experimental.pallas import tpu as pltpu


def tcn_kernel(x_ref, w1_ref, w3_ref, wo_ref, o_ref):
    # x_ref : (1, Din, L)        one sequence: channels on sublanes, time on lanes
    # w1_ref: (H, 3*Din + 1)     tcn_1 weight, taps fused along K, bias as last column
    # w3_ref: (Din, 3*H + 1)     tcn_3 weight, same packing
    # wo_ref: (L + 1, Lout)      Linear(L -> Lout) weight (transposed), bias as last row
    # o_ref : (1, Din, Lout)
    x = x_ref[0]                 # (Din, L)

    def conv3_relu(inp, w_aug):
        # Conv1d(k=3, pad=1) as ONE matmul: y = W_aug @ [x[t-1]; x[t]; x[t+1]; 1].
        # Shifted copies are built with zero-column concats on the lane (time) axis,
        # which also provides the zero padding at the sequence boundaries.
        c, t = inp.shape
        zcol = jnp.zeros((c, 1), inp.dtype)
        prev = jnp.concatenate([zcol, inp[:, : t - 1]], axis=1)   # x[t-1] (0 at t=0)
        nxt = jnp.concatenate([inp[:, 1:], zcol], axis=1)         # x[t+1] (0 at t=L-1)
        ones = jnp.ones((1, t), inp.dtype)
        cols = jnp.concatenate([prev, inp, nxt, ones], axis=0)    # (3c+1, t)
        y = jnp.dot(w_aug, cols.astype(w_aug.dtype),
                    preferred_element_type=jnp.float32)           # (Cout, t) f32
        # ReLU in f32; dropout == identity in inference mode.
        return jnp.maximum(y, 0.0)

    y1 = conv3_relu(x, w1_ref[...])      # (H, L)    f32
    y3 = conv3_relu(y1, w3_ref[...])     # (Din, L)  f32

    # Linear over time: out = y3 @ wo^T + bo, bias folded via an augmented ones column.
    wo = wo_ref[...]
    y3a = jnp.concatenate([y3, jnp.ones((y3.shape[0], 1), y3.dtype)], axis=1)  # (Din, L+1)
    out = jnp.dot(y3a.astype(wo.dtype), wo, preferred_element_type=jnp.float32)
    o_ref[0] = out.astype(o_ref.dtype)   # (Din, Lout); store becomes lane-dense as Lout grows


def my_tcn_forward(x, w1_oiw, b1, w3_oiw, b3, wo, bo, *, matmul_dtype=jnp.float32):
    """Forward pass of myTCN.

    x      : (B, L, Din) float32   (batch, input_len, input_dim)
    w1_oiw : (H, Din, 3)           Conv1d(Din -> H, k=3) weight (PyTorch OIW layout)
    b1     : (H,)
    w3_oiw : (Din, H, 3)           Conv1d(H -> Din, k=3) weight
    b3     : (Din,)
    wo     : (Lout, L)             Linear(input_len -> output_len) weight
    bo     : (Lout,)
    matmul_dtype : dtype of MXU operands (use jnp.bfloat16 on v6e/v7x; accumulation is f32)
    returns (B, Lout, Din) float32
    """
    B, L, Din = x.shape
    H = w1_oiw.shape[0]
    Lout = wo.shape[0]

    # One-time re-layouts in the wrapper (keeps every permute out of the kernel).
    # Tokens-on-lanes activation layout (this is exactly PyTorch's input.transpose(1, 2)).
    x_ncw = jnp.transpose(x, (0, 2, 1)).astype(matmul_dtype)                  # (B, Din, L)
    # Conv weights: (Cout, Cin, 3) -> (Cout, 3*Cin), tap-major / channel-minor, matching the
    # in-kernel im2col row order [x[t-1]; x[t]; x[t+1]]; bias folded as an extra column.
    w1_aug = jnp.concatenate(
        [jnp.transpose(w1_oiw, (0, 2, 1)).reshape(H, 3 * Din), b1[:, None]], axis=1
    ).astype(matmul_dtype)                                                    # (H, 3*Din+1)
    w3_aug = jnp.concatenate(
        [jnp.transpose(w3_oiw, (0, 2, 1)).reshape(Din, 3 * H), b3[:, None]], axis=1
    ).astype(matmul_dtype)                                                    # (Din, 3*H+1)
    # Output Linear: y3 (Din, L) @ wo^T (L, Lout) + bo; bias folded as an extra row.
    wo_aug = jnp.concatenate([wo.T, bo[None, :]], axis=0).astype(matmul_dtype)  # (L+1, Lout)

    out = pl.pallas_call(
        tcn_kernel,
        out_shape=jax.ShapeDtypeStruct((B, Din, Lout), jnp.float32),
        grid=(B,),                     # one whole sequence per step; "parallel" -> both v7x TCs
        in_specs=[
            pl.BlockSpec((1, Din, L), lambda b: (b, 0, 0)),
            # Constant index_maps: weights are fetched once and stay resident across steps.
            pl.BlockSpec((H, 3 * Din + 1), lambda b: (0, 0)),
            pl.BlockSpec((Din, 3 * H + 1), lambda b: (0, 0)),
            pl.BlockSpec((L + 1, Lout), lambda b: (0, 0)),
        ],
        out_specs=pl.BlockSpec((1, Din, Lout), lambda b: (b, 0, 0)),
        compiler_params=pltpu.CompilerParams(
            dimension_semantics=("parallel",),
            # Explicit cap that is safe on every chip (v7x has only 64 MiB physical VMEM).
            vmem_limit_bytes=32 * 1024 * 1024,
        ),
        # If DMA latency shows up exposed at large L, bump pipeline depth on the x/out specs
        # with pipeline_mode=pl.Buffered(3); weights should stay at the default.
    )(x_ncw, w1_aug, w3_aug, wo_aug)

    return jnp.transpose(out, (0, 2, 1))          # (B, Lout, Din)


def reference(x, w1_oiw, b1, w3_oiw, b3, wo, bo):
    """Pure-JAX reference using lax.conv_general_dilated (PyTorch-style cross-correlation)."""
    x_ncw = jnp.transpose(x, (0, 2, 1))            # (B, Din, L)
    dn = ("NCW", "OIW", "NCW")
    y1 = lax.conv_general_dilated(x_ncw, w1_oiw, (1,), ((1, 1),), dimension_numbers=dn)
    y1 = jnp.maximum(y1 + b1[None, :, None], 0.0)  # (B, H, L)
    y3 = lax.conv_general_dilated(y1, w3_oiw, (1,), ((1, 1),), dimension_numbers=dn)
    y3 = jnp.maximum(y3 + b3[None, :, None], 0.0)  # (B, Din, L)
    out = jnp.einsum("bcl,ol->bco", y3, wo) + bo   # (B, Din, Lout)
    return jnp.transpose(out, (0, 2, 1))           # (B, Lout, Din)


if __name__ == "__main__":
    # Small shapes consistent with the module: input_dim=8, hidden_dim=32, input_len=16, output_len=8.
    B, L, Din, H, Lout = 2, 16, 8, 32, 8

    key = jax.random.PRNGKey(0)
    k = jax.random.split(key, 7)
    # Parameter shapes exactly as in the PyTorch module (tcn_2 exists but is unused in forward).
    w1_oiw = 0.1 * jax.random.normal(k[0], (H, Din, 3), jnp.float32)    # Conv1d(Din->H, k=3)
    b1     = 0.1 * jax.random.normal(k[1], (H,), jnp.float32)
    w3_oiw = 0.1 * jax.random.normal(k[2], (Din, H, 3), jnp.float32)    # Conv1d(H->Din, k=3)
    b3     = 0.1 * jax.random.normal(k[3], (Din,), jnp.float32)
    wo     = 0.1 * jax.random.normal(k[4], (Lout, L), jnp.float32)      # Linear(L -> Lout)
    bo     = 0.1 * jax.random.normal(k[5], (Lout,), jnp.float32)
    x      = jax.random.normal(k[6], (B, L, Din), jnp.float32)          # (B, input_len, input_dim)

    ref = reference(x, w1_oiw, b1, w3_oiw, b3, wo, bo)

    # f32 matmul path (exactness check).
    out_f32 = my_tcn_forward(x, w1_oiw, b1, w3_oiw, b3, wo, bo, matmul_dtype=jnp.float32)
    out_f32 = jax.block_until_ready(out_f32)
    assert out_f32.shape == (B, Lout, Din)
    assert jnp.allclose(out_f32, ref, rtol=1e-5, atol=1e-5), "f32 kernel/reference mismatch"

    # bf16 matmul-operand path (the fast path on v6e/v7x MXU; accumulation stays f32).
    out_bf16 = my_tcn_forward(x, w1_oiw, b1, w3_oiw, b3, wo, bo, matmul_dtype=jnp.bfloat16)
    out_bf16 = jax.block_until_ready(out_bf16)
    assert out_bf16.shape == (B, Lout, Din)
    assert jnp.allclose(out_bf16, ref, rtol=5e-2, atol=5e-2), "bf16 kernel/reference mismatch"

    print("KERNEL_OK")
</pallas_src>

<mosaic_0001>
module attributes {stable_mosaic.version = 11 : i64} {
  func.func @tcn_kernel(%arg0: i32, %arg1: memref<1x8x16xf32, #tpu.memory_space<vmem>>, %arg2: memref<32x25xf32, #tpu.memory_space<vmem>>, %arg3: memref<8x97xf32, #tpu.memory_space<vmem>>, %arg4: memref<17x8xf32, #tpu.memory_space<vmem>>, %arg5: memref<1x8x8xf32, #tpu.memory_space<vmem>>) attributes {dimension_semantics = [#tpu.dimension_semantics<parallel>], iteration_bounds = array<i64: 2>, scalar_prefetch = 0 : i64, scratch_operands = 0 : i64, tpu.core_type = #tpu.core_type<tc>, window_params = [{transform_indices = @transform_0, window_bounds = array<i64: 1, 8, 16>}, {pipeline_mode = #tpu.pipeline_mode<synchronous>, transform_indices = @transform_1, window_bounds = array<i64: 32, 25>}, {pipeline_mode = #tpu.pipeline_mode<synchronous>, transform_indices = @transform_2, window_bounds = array<i64: 8, 97>}, {pipeline_mode = #tpu.pipeline_mode<synchronous>, transform_indices = @transform_3, window_bounds = array<i64: 17, 8>}, {transform_indices = @transform_4, window_bounds = array<i64: 1, 8, 8>}]} {
    %c0 = arith.constant 0 : index
    %c0_0 = arith.constant 0 : index
    %c0_1 = arith.constant 0 : index
    %0 = vector.load %arg1[%c0, %c0_0, %c0_1] : memref<1x8x16xf32, #tpu.memory_space<vmem>>, vector<1x8x16xf32>
    %1 = vector.shape_cast %0 : vector<1x8x16xf32> to vector<8x16xf32>
    %c0_2 = arith.constant 0 : index
    %c0_3 = arith.constant 0 : index
    %2 = vector.load %arg2[%c0_2, %c0_3] : memref<32x25xf32, #tpu.memory_space<vmem>>, vector<32x25xf32>
    %cst = arith.constant 0.000000e+00 : f32
    %3 = vector.broadcast %cst : f32 to vector<8x1xf32>
    %4 = vector.extract_strided_slice %1 {offsets = [0, 0], sizes = [8, 15], strides = [1, 1]} : vector<8x16xf32> to vector<8x15xf32>
    %5 = tpu.concatenate %3, %4 in 1 : vector<8x1xf32>, vector<8x15xf32> -> vector<8x16xf32>
    %6 = vector.extract_strided_slice %1 {offsets = [0, 1], sizes = [8, 15], strides = [1, 1]} : vector<8x16xf32> to vector<8x15xf32>
    %7 = tpu.concatenate %6, %3 in 1 : vector<8x15xf32>, vector<8x1xf32> -> vector<8x16xf32>
    %cst_4 = arith.constant 1.000000e+00 : f32
    %8 = vector.broadcast %cst_4 : f32 to vector<1x16xf32>
    %9 = tpu.concatenate %5, %1, %7, %8 in 0 : vector<8x16xf32>, vector<8x16xf32>, vector<8x16xf32>, vector<1x16xf32> -> vector<25x16xf32>
    %cst_5 = arith.constant dense<0.000000e+00> : vector<32x16xf32>
    %10 = tpu.matmul %2, %9, %cst_5 {dimension_numbers = #tpu.dot_dimension_numbers<[1], [0], [0], [1], [0, 0, 1, 1], [], []>} : vector<32x25xf32>, vector<25x16xf32>, vector<32x16xf32> -> vector<32x16xf32>
    %cst_6 = arith.constant 0.000000e+00 : f32
    %11 = vector.broadcast %cst_6 : f32 to vector<32x16xf32>
    %12 = arith.maximumf %10, %11 : vector<32x16xf32>
    %c0_7 = arith.constant 0 : index
    %c0_8 = arith.constant 0 : index
    %13 = vector.load %arg3[%c0_7, %c0_8] : memref<8x97xf32, #tpu.memory_space<vmem>>, vector<8x97xf32>
    %cst_9 = arith.constant 0.000000e+00 : f32
    %14 = vector.broadcast %cst_9 : f32 to vector<32x1xf32>
    %15 = vector.extract_strided_slice %12 {offsets = [0, 0], sizes = [32, 15], strides = [1, 1]} : vector<32x16xf32> to vector<32x15xf32>
    %16 = tpu.concatenate %14, %15 in 1 : vector<32x1xf32>, vector<32x15xf32> -> vector<32x16xf32>
    %17 = vector.extract_strided_slice %12 {offsets = [0, 1], sizes = [32, 15], strides = [1, 1]} : vector<32x16xf32> to vector<32x15xf32>
    %18 = tpu.concatenate %17, %14 in 1 : vector<32x15xf32>, vector<32x1xf32> -> vector<32x16xf32>
    %cst_10 = arith.constant 1.000000e+00 : f32
    %19 = vector.broadcast %cst_10 : f32 to vector<1x16xf32>
    %20 = tpu.concatenate %16, %12, %18, %19 in 0 : vector<32x16xf32>, vector<32x16xf32>, vector<32x16xf32>, vector<1x16xf32> -> vector<97x16xf32>
    %cst_11 = arith.constant dense<0.000000e+00> : vector<8x16xf32>
    %21 = tpu.matmul %13, %20, %cst_11 {dimension_numbers = #tpu.dot_dimension_numbers<[1], [0], [0], [1], [0, 0, 1, 1], [], []>} : vector<8x97xf32>, vector<97x16xf32>, vector<8x16xf32> -> vector<8x16xf32>
    %cst_12 = arith.constant 0.000000e+00 : f32
    %22 = vector.broadcast %cst_12 : f32 to vector<8x16xf32>
    %23 = arith.maximumf %21, %22 : vector<8x16xf32>
    %c0_13 = arith.constant 0 : index
    %c0_14 = arith.constant 0 : index
    %24 = vector.load %arg4[%c0_13, %c0_14] : memref<17x8xf32, #tpu.memory_space<vmem>>, vector<17x8xf32>
    %cst_15 = arith.constant 1.000000e+00 : f32
    %25 = vector.broadcast %cst_15 : f32 to vector<8x1xf32>
    %26 = tpu.concatenate %23, %25 in 1 : vector<8x16xf32>, vector<8x1xf32> -> vector<8x17xf32>
    %cst_16 = arith.constant dense<0.000000e+00> : vector<8x8xf32>
    %27 = tpu.matmul %26, %24, %cst_16 {dimension_numbers = #tpu.dot_dimension_numbers<[1], [0], [0], [1], [0, 0, 1, 1], [], []>} : vector<8x17xf32>, vector<17x8xf32>, vector<8x8xf32> -> vector<8x8xf32>
    %c0_17 = arith.constant 0 : index
    %c0_18 = arith.constant 0 : index
    %c0_19 = arith.constant 0 : index
    %28 = vector.load %arg5[%c0_17, %c0_18, %c0_19] : memref<1x8x8xf32, #tpu.memory_space<vmem>>, vector<1x8x8xf32>
    %29 = vector.shape_cast %28 : vector<1x8x8xf32> to vector<8x8xf32>
    %30 = vector.shape_cast %27 : vector<8x8xf32> to vector<1x8x8xf32>
    tpu.vector_store %arg5[%c0_17, %c0_18, %c0_19], %30 {strides = array<i32>} : memref<1x8x8xf32, #tpu.memory_space<vmem>>, vector<1x8x8xf32>,
    return
  }
  func.func @transform_0(%arg0: i32) -> (i32, i32, i32) {
    %c0_i32 = arith.constant 0 : i32
    %c0_i32_0 = arith.constant 0 : i32
    %c0_i32_1 = arith.constant 0 : i32
    return %arg0, %c0_i32, %c0_i32_0 : i32, i32, i32
  }
  func.func @transform_1(%arg0: i32) -> (i32, i32) {
    %c0_i32 = arith.constant 0 : i32
    %c0_i32_0 = arith.constant 0 : i32
    %c0_i32_1 = arith.constant 0 : i32
    return %c0_i32, %c0_i32_0 : i32, i32
  }
  func.func @transform_2(%arg0: i32) -> (i32, i32) {
    %c0_i32 = arith.constant 0 : i32
    %c0_i32_0 = arith.constant 0 : i32
    %c0_i32_1 = arith.constant 0 : i32
    return %c0_i32, %c0_i32_0 : i32, i32
  }
  func.func @transform_3(%arg0: i32) -> (i32, i32) {
    %c0_i32 = arith.constant 0 : i32
    %c0_i32_0 = arith.constant 0 : i32
    %c0_i32_1 = arith.constant 0 : i32
    return %c0_i32, %c0_i32_0 : i32, i32
  }
  func.func @transform_4(%arg0: i32) -> (i32, i32, i32) {
    %c0_i32 = arith.constant 0 : i32
    %c0_i32_0 = arith.constant 0 : i32
    %c0_i32_1 = arith.constant 0 : i32
    return %arg0, %c0_i32, %c0_i32_0 : i32, i32, i32
  }
}

</mosaic_0001>

<llo_original>
// kernel: tpu_custom_call.1
$region0: #{tpu_custom_call.1}
  #allocation0 [shape = 'u32[]', space=smem, size = 0x4, offset = 0x4, fixed_abs, tag = 'smem constant byte address 0x4 - core index']
  #allocation1 [shape = 'u32[72,128]{1,0:T(1,128)}', space=vmem, size = 0x9000, scoped, tag = 'internal scratch']
  %s0 = inlined_call_operand.hbm [shape: f32[2,8,16], index: 0, kind: input, shape index: {}]
  %s1 = inlined_call_operand.vmem [shape: f32[32,25], index: 1, kind: input, shape index: {}]
  %s2 = inlined_call_operand.hbm [shape: f32[8,97], index: 2, kind: input, shape index: {}]
  %s3 = inlined_call_operand.vmem [shape: f32[17,8], index: 3, kind: input, shape index: {}]
  %s4 = inlined_call_operand.hbm [shape: f32[2,8,8], index: 4, kind: output, shape index: {}]
  %s5 = sld [smem:[#allocation0]]
  $region57: #{tpu_custom_call.1} parent=0
    _
  %s7 = ssub.s32 1, %s5
  %s8 = scalar_select 0, %s7, %s5
  $region1: #{tpu_custom_call.1} parent=0
    #allocation2 [shape = 'u8[8192]{0}', space=vmem, size = 0x2000, scoped, tag = 'input window, operand 0']
    #allocation3 [shape = 's32[2]{0}', space=sflag, size = 0x8, scoped, tag = 'scoped memory for tpu_custom_call.1']
    #allocation4 [shape = 's32[2]{0}', space=sflag, size = 0x8, scoped, tag = 'scoped memory for tpu_custom_call.1']
    #allocation5 [shape = 'u8[4096]{0}', space=vmem, size = 0x1000, scoped, tag = 'input window, operand 2, single buffered']
    #allocation6 [shape = 's32[1]{0}', space=sflag, size = 0x4, scoped, tag = 'scoped memory for tpu_custom_call.1']
    #allocation7 [shape = 'u8[8192]{0}', space=vmem, size = 0x2000, scoped, tag = 'output window, operand 0']
    %9 = vsyncpa [#allocation3], 0
    %s10 = scalar_lea.sflag [#allocation3], 1
    %11 = vsyncpa %s10, 0
    %12 = vsyncpa [#allocation6], 0
    %13 = vsyncpa [#allocation4], 0
    %s14 = scalar_lea.sflag [#allocation4], 1
    %15 = vsyncpa %s14, 0
    loop: start=0, step=1, limit=4
    $region2: #{tpu_custom_call.1} parent=1 // loop_pre_header
      _
    $region3: #{tpu_custom_call.1} parent=1 // loop_header
      %s17 = sphi 0, %s21
      %p18 = scmp.ge.s32.totalorder %s17, 4
      %s27 = sphi 0, %s29
      %s30 = sphi 0, %s27
      %s31 = sphi 0, %s30
      %s47 = sphi 0, %s31
      %s51 = sphi 0, %s51
      %s53 = sphi 0, %s51
      %s54 = sphi 0, %s53
      %s68 = sphi 0, %s54
      %s72 = sphi 0, %s72
      %s74 = sphi 0, %s72
      %s75 = sphi 0, %s74
      %s89 = sphi 0, %s75
      %s93 = sphi 0, %s93
      %s95 = sphi 0, %s93
      %s96 = sphi 0, %s95
      %s110 = sphi 0, %s96
      %s116 = sphi 0, %s118
      %s119 = sphi 0, %s116
      %s120 = sphi 0, %s119
      %s136 = sphi 0, %s120
    $region4: #{tpu_custom_call.1} parent=1 // loop_header_branch
      %20 = sbr.rel (%p18) target = $region8
    $region5: #{tpu_custom_call.1} parent=1 // loop_body
      %s22 = ssub.s32 %s17, 1
      %s23 = ssub.s32 %s17, 2
      %s24 = sadd.s32 %s17, 1
      %s25 = ssub.s32 %s17, %s24
      %p26 = scmp.eq.s32.totalorder %s25, 0
      %s28 = sadd.s32 %s27, 1
      %s29 = scalar_select %p26, %s27, %s28
      %p32 = pneg %p26
      %p33 = scmp.eq.s32.totalorder %s17, 1
      %p34 = por %p32, %p33
      %p35 = scmp.ne.s32.totalorder %s27, %s30
      %p36 = scmp.eq.s32.totalorder %s17, 0
      %p37 = por %p35, %p36
      %p38 = scmp.ne.s32.totalorder %s27, %s30
      %p39 = scmp.eq.s32.totalorder %s22, 1
      %p40 = por %p38, %p39
      %p41 = scmp.ne.s32.totalorder %s30, %s31
      %p42 = scmp.eq.s32.totalorder %s22, 0
      %p43 = por %p41, %p42
      %p44 = scmp.ne.s32.totalorder %s30, %s31
      %p45 = scmp.eq.s32.totalorder %s23, 1
      %p46 = por %p44, %p45
      %p48 = scmp.ne.s32.totalorder %s31, %s47
      %p49 = scmp.eq.s32.totalorder %s23, 0
      %p50 = por %p48, %p49
      %s52 = sadd.s32 %s51, 1
      %p55 = scmp.eq.s32.totalorder %s17, 1
      %p56 = scmp.ne.s32.totalorder %s51, %s53
      %p57 = scmp.eq.s32.totalorder %s17, 0
      %p58 = por %p56, %p57
      %p59 = scmp.ne.s32.totalorder %s51, %s53
      %p60 = scmp.eq.s32.totalorder %s22, 1
      %p61 = por %p59, %p60
      %p62 = scmp.ne.s32.totalorder %s53, %s54
      %p63 = scmp.eq.s32.totalorder %s22, 0
      %p64 = por %p62, %p63
      %p65 = scmp.ne.s32.totalorder %s53, %s54
      %p66 = scmp.eq.s32.totalorder %s23, 1
      %p67 = por %p65, %p66
      %p69 = scmp.ne.s32.totalorder %s54, %s68
      %p70 = scmp.eq.s32.totalorder %s23, 0
      %p71 = por %p69, %p70
      %s73 = sadd.s32 %s72, 1
      %p76 = scmp.eq.s32.totalorder %s17, 1
      %p77 = scmp.ne.s32.totalorder %s72, %s74
      %p78 = scmp.eq.s32.totalorder %s17, 0
      %p79 = por %p77, %p78
      %p80 = scmp.ne.s32.totalorder %s72, %s74
      %p81 = scmp.eq.s32.totalorder %s22, 1
      %p82 = por %p80, %p81
      %p83 = scmp.ne.s32.totalorder %s74, %s75
      %p84 = scmp.eq.s32.totalorder %s22, 0
      %p85 = por %p83, %p84
      %p86 = scmp.ne.s32.totalorder %s74, %s75
      %p87 = scmp.eq.s32.totalorder %s23, 1
      %p88 = por %p86, %p87
      %p90 = scmp.ne.s32.totalorder %s75, %s89
      %p91 = scmp.eq.s32.totalorder %s23, 0
      %p92 = por %p90, %p91
      %s94 = sadd.s32 %s93, 1
      %p97 = scmp.eq.s32.totalorder %s17, 1
      %p98 = scmp.ne.s32.totalorder %s93, %s95
      %p99 = scmp.eq.s32.totalorder %s17, 0
      %p100 = por %p98, %p99
      %p101 = scmp.ne.s32.totalorder %s93, %s95
      %p102 = scmp.eq.s32.totalorder %s22, 1
      %p103 = por %p101, %p102
      %p104 = scmp.ne.s32.totalorder %s95, %s96
      %p105 = scmp.eq.s32.totalorder %s22, 0
      %p106 = por %p104, %p105
      %p107 = scmp.ne.s32.totalorder %s95, %s96
      %p108 = scmp.eq.s32.totalorder %s23, 1
      %p109 = por %p107, %p108
      %p111 = scmp.ne.s32.totalorder %s96, %s110
      %p112 = scmp.eq.s32.totalorder %s23, 0
      %p113 = por %p111, %p112
      %s114 = ssub.s32 %s17, %s24
      %p115 = scmp.eq.s32.totalorder %s114, 0
      %s117 = sadd.s32 %s116, 1
      %s118 = scalar_select %p115, %s116, %s117
      %p121 = pneg %p115
      %p122 = scmp.eq.s32.totalorder %s17, 1
      %p123 = por %p121, %p122
      %p124 = scmp.ne.s32.totalorder %s116, %s119
      %p125 = scmp.eq.s32.totalorder %s17, 0
      %p126 = por %p124, %p125
      %p127 = scmp.ne.s32.totalorder %s116, %s119
      %p128 = scmp.eq.s32.totalorder %s22, 1
      %p129 = por %p127, %p128
      %p130 = scmp.ne.s32.totalorder %s119, %s120
      %p131 = scmp.eq.s32.totalorder %s22, 0
      %p132 = por %p130, %p131
      %p133 = scmp.ne.s32.totalorder %s119, %s120
      %p134 = scmp.eq.s32.totalorder %s23, 1
      %p135 = por %p133, %p134
      %p137 = scmp.ne.s32.totalorder %s120, %s136
      %p138 = scmp.eq.s32.totalorder %s23, 0
      %p139 = por %p137, %p138
      %p140 = scmp.le.s32.totalorder 1, %s17
      %p141 = scmp.lt.s32.totalorder %s17, 3
      %p142 = pnand %p140, %p141
      %p143 = pneg %p142
      // Predicated region
      $region9: #{tpu_custom_call.1} parent=5 // pred_check
        _
      $region10: #{tpu_custom_call.1} parent=5 // pred_check_branch
        %145 = sbr.rel (%p142) target = $region12
      $region11: #{tpu_custom_call.1} parent=5 // pred_region
        %s146 = ssub.s32 %s17, 1
        // Predicated region
        $region13: #{tpu_custom_call.1} parent=11 // pred_check
          %p147 = pneg %p64
        $region14: #{tpu_custom_call.1} parent=11 // pred_check_branch
          %149 = sbr.rel (%p147) target = $region16
        $region15: #{tpu_custom_call.1} parent=11 // pred_region
          _
        $region16: #{tpu_custom_call.1} parent=11 // pred_fallthru
          _
        // Predicated region
        $region17: #{tpu_custom_call.1} parent=11 // pred_check
          %p150 = pneg %p85
        $region18: #{tpu_custom_call.1} parent=11 // pred_check_branch
          %152 = sbr.rel (%p150) target = $region20
        $region19: #{tpu_custom_call.1} parent=11 // pred_region
          %154 = vsyncadd [#allocation6], 0
          %s156 = sshll.u32 %s2, 4
          %s157 = int_to_ptr.hbm [resolvable:$true] %s156
          %s158 = sshll.u32 [#allocation5], 4
          %s159 = int_to_ptr.vmem [resolvable:$true] %s158
          %161 = dma.hbm_to_vmem [thread:$0]  %s157, 128, %s159, [#allocation6]
        $region20: #{tpu_custom_call.1} parent=11 // pred_fallthru
          _
        // Predicated region
        $region21: #{tpu_custom_call.1} parent=11 // pred_check
          %p162 = pneg %p106
        $region22: #{tpu_custom_call.1} parent=11 // pred_check_branch
          %164 = sbr.rel (%p162) target = $region24
        $region23: #{tpu_custom_call.1} parent=11 // pred_region
          _
        $region24: #{tpu_custom_call.1} parent=11 // pred_fallthru
          _
      $region12: #{tpu_custom_call.1} parent=5 // pred_fallthru
        _
      %p165 = scmp.lt.s32.totalorder %s17, 2
      // Predicated region
      $region25: #{tpu_custom_call.1} parent=5 // pred_check
        %p166 = pneg %p165
      $region26: #{tpu_custom_call.1} parent=5 // pred_check_branch
        %168 = sbr.rel (%p166) target = $region28
      $region27: #{tpu_custom_call.1} parent=5 // pred_region
        // Predicated region
        $region29: #{tpu_custom_call.1} parent=27 // pred_check
          %p169 = pneg %p37
        $region30: #{tpu_custom_call.1} parent=27 // pred_check_branch
          %171 = sbr.rel (%p169) target = $region32
        $region31: #{tpu_custom_call.1} parent=27 // pred_region
          %s172 = sand.u32 %s27, 1
          %s173 = scalar_lea.sflag [#allocation3], %s172
          %s174 = sand.u32 %s27, 1
          %s175 = smul.addr %s174, 8
          %s176 = scalar_lea.vmem [#allocation2], %s175
          %178 = vsyncadd %s173, 0
          %s179 = smul.addr %s17, 8
          %s180 = scalar_lea.hbm %s0, %s179
          %s182 = sshll.u32 %s180, 4
          %s183 = int_to_ptr.hbm [resolvable:$true] %s182
          %s184 = sshll.u32 %s176, 4
          %s185 = int_to_ptr.vmem [resolvable:$true] %s184
          %187 = dma.hbm_to_vmem [thread:$0]  %s183, 128, %s185, %s173
        $region32: #{tpu_custom_call.1} parent=27 // pred_fallthru
          _
      $region28: #{tpu_custom_call.1} parent=5 // pred_fallthru
        _
      %p188 = scmp.le.s32.totalorder 1, %s17
      %p189 = scmp.lt.s32.totalorder %s17, 3
      %p190 = pnand %p188, %p189
      %p191 = pneg %p190
      // Predicated region
      $region33: #{tpu_custom_call.1} parent=5 // pred_check
        _
      $region34: #{tpu_custom_call.1} parent=5 // pred_check_branch
        %193 = sbr.rel (%p190) target = $region36
      $region35: #{tpu_custom_call.1} parent=5 // pred_region
        %s194 = ssub.s32 %s17, 1
        %s195 = sand.u32 %s30, 1
        %s196 = scalar_lea.sflag [#allocation3], %s195
        %s197 = sand.u32 %s30, 1
        %s198 = smul.addr %s197, 8
        %s199 = scalar_lea.vmem [#allocation2], %s198
        // Predicated region
        $region37: #{tpu_custom_call.1} parent=35 // pred_check
          %p200 = pneg %p43
        $region38: #{tpu_custom_call.1} parent=35 // pred_check_branch
          %202 = sbr.rel (%p200) target = $region40
        $region39: #{tpu_custom_call.1} parent=35 // pred_region
          %204 = dma.done %s196, 128
        $region40: #{tpu_custom_call.1} parent=35 // pred_fallthru
          _
        // Predicated region
        $region41: #{tpu_custom_call.1} parent=35 // pred_check
          %p205 = pneg %p85
        $region42: #{tpu_custom_call.1} parent=35 // pred_check_branch
          %207 = sbr.rel (%p205) target = $region44
        $region43: #{tpu_custom_call.1} parent=35 // pred_region
          %209 = dma.done [#allocation6], 128
        $region44: #{tpu_custom_call.1} parent=35 // pred_fallthru
          _
        %s210 = sand.u32 %s30, 1
        %s211 = scalar_lea.sflag [#allocation3], %s210
        %s212 = sand.u32 %s30, 1
        %s213 = smul.addr %s212, 8
        %s214 = scalar_lea.vmem [#allocation2], %s213
        %p215 = pneg %p43
        %p216 = pneg %p40
        %p217 = pneg %p64
        %p218 = pneg %p61
        %p219 = pneg %p85
        %p220 = pneg %p82
        %p221 = pneg %p106
        %p222 = pneg %p103
        %p223 = pneg %p132
        %p224 = pneg %p129
        %s225 = sand.u32 %s119, 1
        %s226 = scalar_lea.sflag [#allocation4], %s225
        %s227 = sand.u32 %s119, 1
        %s228 = smul.addr %s227, 8
        %s229 = scalar_lea.vmem [#allocation7], %s228
        %v230 = vld [vmem:[%s199] sm:$0xff]
        %v231 = vld [vmem:[%s1] sm:$0xff]
        %v232 = vld [vmem:[%s1 + $0x8] sm:$0xff]
        %v233 = vld [vmem:[%s1 + $0x10] sm:$0xff]
        %v234 = vld [vmem:[%s1 + $0x18] sm:$0xff]
        %236 = vrot.lane.b32.xlu0 %v230, 1
        %v237 = vpop.permute.xlu0 %236
        %vm239 = vcmask 7168
        %v240 = vsel %vm239, 0.0, %v237
        %241 = vrot.lane.b32.xlu0 %v230, 127
        %v242 = vpop.permute.xlu0 %241
        %vm244 = vcmask 121856
        %v245 = vsel %vm244, %v242, 0.0
        %vm246 = vcmask 203776
        %v248 = vsel %vm246, %v231, 0
        %v251 = vsel %vm246, %v232, 0
        %v254 = vsel %vm246, %v233, 0
        %v257 = vsel %vm246, %v234, 0
        %vm259 = vcmask 1040384
        %v261 = vsel %vm259, 1.0, 0
        %263 = vmatpush.msra.mxu0 0.0
        %264 = vmatpush.msra.mxu0 0.0
        %265 = vmatpush.msra.mxu0 0.0
        %266 = vmatpush.msra.mxu0 0.0
        %267 = vmatpush.msra.mxu0 0.0
        %268 = vmatpush.msra.mxu0 0.0
        %269 = vmatpush.msra.mxu0 0.0
        %270 = vmatpush.msra.mxu0 0.0
        %271 = vmatpush.msra.mxu0 0.0
        %272 = vmatpush.msra.mxu0 0.0
        %273 = vmatpush.msra.mxu0 0.0
        %274 = vmatpush.msra.mxu0 0.0
        %275 = vmatpush.msra.mxu0 %v261
        %276 = vmatpush.msra.mxu0 %v245
        %277 = vmatpush.msra.mxu0 %v230
        %278 = vmatpush.msra.mxu0 %v240
        %279 = vmatmul.f32.gmra.mxu0 %v248
        %v280 = vpop.f32.mrf.mxu0
        %v281 = vadd.f32 0.0, %v280
        %282 = vmatmul.f32.gmra.mxu0 %v251
        %v283 = vpop.f32.mrf.mxu0
        %v284 = vadd.f32 0.0, %v283
        %285 = vmatmul.f32.gmra.mxu0 %v254
        %v286 = vpop.f32.mrf.mxu0
        %v287 = vadd.f32 0.0, %v286
        %288 = vmatmul.f32.gmra.mxu0 %v257
        %v289 = vpop.f32.mrf.mxu0
        %v290 = vadd.f32 0.0, %v289
        %291 = vdwg.mxu0
        %v292 = vmax.f32 %v281, 0.0
        %v293 = vmax.f32 %v284, 0.0
        %v294 = vmax.f32 %v287, 0.0
        %v295 = vmax.f32 %v290, 0.0
        %v296 = vld [vmem:[#allocation5] sm:$0xff]
        %301 = vrot.lane.b32.xlu0 %v292, 1
        %v302 = vpop.permute.xlu0 %301
        %303 = vrot.lane.b32.xlu0 %v293, 1
        %v304 = vpop.permute.xlu0 %303
        %305 = vrot.lane.b32.xlu0 %v294, 1
        %v306 = vpop.permute.xlu0 %305
        %307 = vrot.lane.b32.xlu0 %v295, 1
        %v308 = vpop.permute.xlu0 %307
        %v313 = vsel %vm239, 0.0, %v302
        %v314 = vsel %vm239, 0.0, %v304
        %v315 = vsel %vm239, 0.0, %v306
        %v316 = vsel %vm239, 0.0, %v308
        %317 = vrot.lane.b32.xlu0 %v292, 127
        %v318 = vpop.permute.xlu0 %317
        %319 = vrot.lane.b32.xlu0 %v293, 127
        %v320 = vpop.permute.xlu0 %319
        %321 = vrot.lane.b32.xlu0 %v294, 127
        %v322 = vpop.permute.xlu0 %321
        %323 = vrot.lane.b32.xlu0 %v295, 127
        %v324 = vpop.permute.xlu0 %323
        %v329 = vsel %vm244, %v318, 0.0
        %v330 = vsel %vm244, %v320, 0.0
        %v331 = vsel %vm244, %v322, 0.0
        %v332 = vsel %vm244, %v324, 0.0
        %vm333 = vcmask 793600
        %v335 = vsel %vm333, %v296, 0
        %337 = vmatpush.msra.mxu0 0.0
        %338 = vmatpush.msra.mxu0 0.0
        %339 = vmatpush.msra.mxu0 0.0
        %340 = vmatpush.msra.mxu0 %v261
        %341 = vmatpush.msra.mxu0 %v332
        %342 = vmatpush.msra.mxu0 %v331
        %343 = vmatpush.msra.mxu0 %v330
        %344 = vmatpush.msra.mxu0 %v329
        %345 = vmatpush.msra.mxu0 %v295
        %346 = vmatpush.msra.mxu0 %v294
        %347 = vmatpush.msra.mxu0 %v293
        %348 = vmatpush.msra.mxu0 %v292
        %349 = vmatpush.msra.mxu0 %v316
        %350 = vmatpush.msra.mxu0 %v315
        %351 = vmatpush.msra.mxu0 %v314
        %352 = vmatpush.msra.mxu0 %v313
        %353 = vmatmul.f32.gmra.mxu0 %v335
        %v354 = vpop.f32.mrf.mxu0
        %v355 = vadd.f32 0.0, %v354
        %356 = vdwg.mxu0
        %v357 = vmax.f32 %v355, 0.0
        %v358 = vld [vmem:[%s3] sm:$0xff]
        %v359 = vld [vmem:[%s3 + $0x8] sm:$0xff]
        %v360 = vld [vmem:[%s3 + $0x10] sm:$0x1]
        %vm361 = vcmask 130048
        %v362 = vsel %vm361, %v357, 1.0
        %vm363 = vcmask 138240
        %v365 = vsel %vm363, %v362, 0
        %v368 = vsel %vm259, %v360, 0
        %370 = vmatpush.msra.mxu0 0.0
        %371 = vmatpush.msra.mxu0 0.0
        %372 = vmatpush.msra.mxu0 0.0
        %373 = vmatpush.msra.mxu0 0.0
        %374 = vmatpush.msra.mxu0 0.0
        %375 = vmatpush.msra.mxu0 0.0
        %376 = vmatpush.msra.mxu0 0.0
        %377 = vmatpush.msra.mxu0 0.0
        %378 = vmatpush.msra.mxu0 0.0
        %379 = vmatpush.msra.mxu0 0.0
        %380 = vmatpush.msra.mxu0 0.0
        %381 = vmatpush.msra.mxu0 0.0
        %382 = vmatpush.msra.mxu0 0.0
        %383 = vmatpush.msra.mxu0 %v368
        %384 = vmatpush.msra.mxu0 %v359
        %385 = vmatpush.msra.mxu0 %v358
        %386 = vmatmul.f32.gmra.mxu0 %v365
        %v387 = vpop.f32.mrf.mxu0
        %v388 = vadd.f32 0.0, %v387
        %389 = vdwg.mxu0
        %vm390 = vcmask 64512
        %391 = vst.msk [vmem:[%s229] sm:$0xff] %vm390, %v388
        %s392 = sand.u32 %s119, 1
        %s393 = scalar_lea.sflag [#allocation4], %s392
        %s394 = sand.u32 %s119, 1
        %s395 = smul.addr %s394, 8
        %s396 = scalar_lea.vmem [#allocation7], %s395
        // Predicated region
        $region45: #{tpu_custom_call.1} parent=35 // pred_check
          %p397 = pneg %p129
        $region46: #{tpu_custom_call.1} parent=35 // pred_check_branch
          %399 = sbr.rel (%p397) target = $region48
        $region47: #{tpu_custom_call.1} parent=35 // pred_region
          %401 = vsyncadd %s393, 0
          %s402 = smul.addr %s22, 8
          %s403 = scalar_lea.hbm %s4, %s402
          %s405 = sshll.u32 %s396, 4
          %s406 = int_to_ptr.vmem [resolvable:$true] %s405
          %s407 = sshll.u32 %s403, 4
          %s408 = int_to_ptr.hbm [resolvable:$true] %s407
          %410 = dma.vmem_to_hbm [thread:$0]  %s406, 128, %s408, %s393
        $region48: #{tpu_custom_call.1} parent=35 // pred_fallthru
          _
      $region36: #{tpu_custom_call.1} parent=5 // pred_fallthru
        _
      %p411 = scmp.le.s32.totalorder 2, %s17
      // Predicated region
      $region49: #{tpu_custom_call.1} parent=5 // pred_check
        %p412 = pneg %p411
      $region50: #{tpu_custom_call.1} parent=5 // pred_check_branch
        %414 = sbr.rel (%p412) target = $region52
      $region51: #{tpu_custom_call.1} parent=5 // pred_region
        %s415 = ssub.s32 %s17, 2
        // Predicated region
        $region53: #{tpu_custom_call.1} parent=51 // pred_check
          %p416 = pneg %p135
        $region54: #{tpu_custom_call.1} parent=51 // pred_check_branch
          %418 = sbr.rel (%p416) target = $region56
        $region55: #{tpu_custom_call.1} parent=51 // pred_region
          %s419 = sand.u32 %s120, 1
          %s420 = scalar_lea.sflag [#allocation4], %s419
          %s421 = sand.u32 %s120, 1
          %s422 = smul.addr %s421, 8
          %s423 = scalar_lea.vmem [#allocation7], %s422
          %425 = dma.done %s420, 128
        $region56: #{tpu_custom_call.1} parent=51 // pred_fallthru
          _
      $region52: #{tpu_custom_call.1} parent=5 // pred_fallthru
        _
    $region6: #{tpu_custom_call.1} parent=1 // loop_footer
      %s21 = sadd.s32 1, %s17
    $region7: #{tpu_custom_call.1} parent=1 // loop_footer_branch
      %16 = sbr.rel target = $region3
    $region8: #{tpu_custom_call.1} parent=1 // loop_exit
      _
    %426 = vsyncpa [#allocation3], 1
    %s427 = scalar_lea.sflag [#allocation3], 1
    %428 = vsyncpa %s427, 1
    %429 = vsyncpa [#allocation6], 1
    %430 = vsyncpa [#allocation4], 1
    %s431 = scalar_lea.sflag [#allocation4], 1
    %432 = vsyncpa %s431, 1

</llo_original>
